<compile_context>
chip_gen: v7x
topology: tpu7x:2x2x1
jax: 0.10.0
libtpu: 0.0.40
codegen_flags: <defaults>
</compile_context>

<pallas_src>
import functools

import jax
import jax.numpy as jnp
from jax import lax
from jax.experimental import pallas as pl
from jax.experimental.pallas import tpu as pltpu

LANE = 128


def _round_up(v, m):
    return ((v + m - 1) // m) * m


def _vmem_capacity_bytes():
    """Per-core VMEM (128 MiB v5e/v6e, 64 MiB v7x); conservative if unknown."""
    try:
        return int(pltpu.get_tpu_info().vmem_capacity_bytes)
    except Exception:
        return 64 * 1024 * 1024


def choose_tile_m():
    # 256-row tiles fill v6e's 256-wide MXU and halve per-grid-step overhead;
    # v7x (64 MiB VMEM/core) stays at 128 so the double-buffered A row tile plus
    # the (N,H)/(N,C) residents keep headroom.
    return 256 if _vmem_capacity_bytes() >= 96 * 1024 * 1024 else 128


def _vmem_limit_bytes():
    cap = _vmem_capacity_bytes()
    return int(min(cap * 3 // 4, 100 * 1024 * 1024))   # ~96 MiB v5e/v6e, ~48 MiB v7x


def supports_single_buffering():
    """Probe whether this jax build lowers pipeline_mode=pl.Buffered(1) on TPU."""
    try:
        def _k(x_ref, o_ref):
            o_ref[...] = x_ref[...] + 1.0

        out = pl.pallas_call(
            _k,
            out_shape=jax.ShapeDtypeStruct((8, LANE), jnp.float32),
            grid=(2,),
            in_specs=[pl.BlockSpec((8, LANE), lambda i: (0, 0),
                                   pipeline_mode=pl.Buffered(1))],
            out_specs=pl.BlockSpec((8, LANE), lambda i: (0, 0)),
        )(jnp.zeros((8, LANE), jnp.float32))
        jax.block_until_ready(out)
        return True
    except Exception:
        return False


def fused_gcn_kernel(a_ref, xw1_ref, b1_ref, w2_ref, o_ref):
    """grid = (2 cores [parallel], row_tiles_per_core [arbitrary/reduction]).

    Per row tile (rows r of A_hat), using A_hat == A_hat^T:
        H1_r = relu(A[r,:] @ XW1 + b1)      (tile_m, H)
        Z_r  = H1_r @ W2                    (tile_m, C)
        OUT += A[r,:]^T @ Z_r               (N, C)  -- this core's partial sum
    """
    i = pl.program_id(1)

    @pl.when(i == 0)
    def _init():
        o_ref[...] = jnp.zeros_like(o_ref)

    a = a_ref[...]                                                  # (tile_m, n_p) bf16
    agg = jnp.dot(a, xw1_ref[...], preferred_element_type=jnp.float32)
    h1 = jnp.maximum(agg + b1_ref[...], 0.0)                        # f32 bias + relu
    z = jnp.dot(h1.astype(jnp.bfloat16), w2_ref[...],
                preferred_element_type=jnp.float32)                 # (tile_m, c_p)
    # Scatter back through the symmetric adjacency: contract A's row (tile) axis.
    contrib = lax.dot_general(a, z.astype(jnp.bfloat16),
                              dimension_numbers=(((0,), (0,)), ((), ())),
                              preferred_element_type=jnp.float32)   # (n_p, c_p)
    o_ref[...] += contrib[None]


def prepare_adjacency(a_hat, *, tile_m):
    """Pad A_hat to (n_p, n_p) and cast to bf16 ONCE (hoisted out of the forward)."""
    if not bool(jnp.allclose(a_hat, a_hat.T, atol=1e-6)):
        # TODO(synk): two-pass variant (A and A^T) for directed graphs.
        raise ValueError("single-pass kernel requires a symmetric normalized "
                         "adjacency (GraphConv norm='both' on an undirected graph)")
    n = a_hat.shape[0]
    n_p = _round_up(n, 2 * tile_m)          # 2 cores x tile_m rows each, minimum
    a_p = jnp.pad(a_hat, ((0, n_p - n), (0, n_p - n))).astype(jnp.bfloat16)
    return jax.block_until_ready(a_p)


@functools.partial(jax.jit, static_argnames=("tile_m", "single_buffer"))
def gcn_forward(a_padded, x, params, *, tile_m, single_buffer=False):
    """Fused two-layer GCN forward; returns (N, num_classes) f32 logits."""
    w1, b1, w2, b2 = params
    n, _ = x.shape
    hf = w1.shape[1]
    nc = w2.shape[1]
    n_p = a_padded.shape[0]
    assert n_p % (2 * tile_m) == 0, "prepare_adjacency() must use the same tile_m"

    h_p = _round_up(hf, LANE)
    c_p = _round_up(nc, LANE)

    # Reassociated layer 1: XW1 = X @ W1 computed once by XLA (tiny vs N^2 work),
    # padded lane-dense and cast to bf16 for the MXU.  Zero padding keeps padded
    # hidden/class columns exactly zero.
    xw1 = jnp.dot(x, w1, preferred_element_type=jnp.float32)
    xw1_p = jnp.pad(xw1, ((0, n_p - n), (0, h_p - hf))).astype(jnp.bfloat16)
    b1_p = jnp.pad(b1, (0, h_p - hf)).reshape(1, h_p).astype(jnp.float32)
    w2_p = jnp.pad(w2, ((0, h_p - hf), (0, c_p - nc))).astype(jnp.bfloat16)

    tiles_per_core = n_p // (2 * tile_m)
    grid = (2, tiles_per_core)              # (core split, row-tile reduction)

    def _const_spec(shape):
        # Constant-index operands: single-buffer them when supported.
        if single_buffer:
            return pl.BlockSpec(shape, lambda c, i: (0,) * len(shape),
                                pipeline_mode=pl.Buffered(1))
        return pl.BlockSpec(shape, lambda c, i: (0,) * len(shape))

    flops = 2 * n_p * n_p * (h_p + c_p) + 2 * n_p * h_p * c_p
    bytes_accessed = (a_padded.size * 2                      # A_hat read ONCE (bf16)
                      + xw1_p.size * 2 + w2_p.size * 2 + b1_p.size * 4
                      + 2 * n_p * c_p * 4)                   # two f32 partial outputs

    parts = pl.pallas_call(
        fused_gcn_kernel,
        out_shape=jax.ShapeDtypeStruct((2, n_p, c_p), jnp.float32),
        grid_spec=pltpu.PrefetchScalarGridSpec(
            num_scalar_prefetch=0,
            grid=grid,
            in_specs=[
                # A_hat row tile: the only per-step HBM stream.
                pl.BlockSpec((tile_m, n_p),
                             lambda c, i: (c * tiles_per_core + i, 0)),
                _const_spec((n_p, h_p)),      # XW1 (VMEM resident)
                _const_spec((1, h_p)),        # b1
                _const_spec((h_p, c_p)),      # W2
            ],
            # Per-core partial accumulator; block index constant over the row-tile
            # axis so it stays VMEM-resident and is flushed once per core.
            out_specs=pl.BlockSpec((1, n_p, c_p), lambda c, i: (c, 0, 0)),
        ),
        compiler_params=pltpu.CompilerParams(
            dimension_semantics=("parallel", "arbitrary"),
            vmem_limit_bytes=_vmem_limit_bytes(),
        ),
        cost_estimate=pl.CostEstimate(
            flops=flops, transcendentals=0, bytes_accessed=bytes_accessed),
    )(a_padded, xw1_p, b1_p, w2_p)

    # Combine the two cores' partials, add the layer-2 bias, drop padding.
    return parts[0, :n, :nc] + parts[1, :n, :nc] + b2[None, :]


def build_normalized_adjacency(key, num_nodes):
    """Deterministic synthetic undirected graph -> symmetric normalized A_hat."""
    logits = jax.random.uniform(key, (num_nodes, num_nodes))
    adj = (logits > 0.7).astype(jnp.float32)
    adj = jnp.maximum(adj, adj.T)                   # symmetrize (undirected)
    adj = jnp.maximum(adj, jnp.eye(num_nodes))      # self-loops (no zero degree)
    deg = jnp.sum(adj, axis=1)
    d_inv_sqrt = 1.0 / jnp.sqrt(deg)
    return (d_inv_sqrt[:, None] * adj * d_inv_sqrt[None, :]).astype(jnp.float32)


def init_params(key, in_feats, h_feats, num_classes):
    """Glorot-uniform weights (as in DGL GraphConv), zero biases."""
    k1, k2 = jax.random.split(key)

    def glorot(k, fan_in, fan_out):
        limit = jnp.sqrt(6.0 / (fan_in + fan_out))
        return jax.random.uniform(k, (fan_in, fan_out), jnp.float32, -limit, limit)

    w1 = glorot(k1, in_feats, h_feats)
    b1 = jnp.zeros((h_feats,), jnp.float32)
    w2 = glorot(k2, h_feats, num_classes)
    b2 = jnp.zeros((num_classes,), jnp.float32)
    return w1, b1, w2, b2


if __name__ == "__main__":
    num_nodes, in_feats, h_feats, num_classes = 16, 8, 32, 4

    root = jax.random.PRNGKey(0)
    k_graph, k_feat, k_param = jax.random.split(root, 3)

    a_hat = build_normalized_adjacency(k_graph, num_nodes)
    x = jax.random.normal(k_feat, (num_nodes, in_feats), jnp.float32)
    params = init_params(k_param, in_feats, h_feats, num_classes)

    tile_m = choose_tile_m()                        # generation-aware (v7x vs v5e/v6e)
    single_buffer = supports_single_buffering()     # pl.Buffered(1) capability probe
    a_prep = prepare_adjacency(a_hat, tile_m=tile_m)  # pad + bf16 cast, hoisted

    logits = gcn_forward(a_prep, x, params, tile_m=tile_m, single_buffer=single_buffer)
    jax.block_until_ready(logits)

    # Pure-JAX f32 reference of the same math (relaxed tol for bf16 MXU operands).
    w1, b1, w2, b2 = params
    ref = jnp.maximum(a_hat @ x @ w1 + b1, 0.0)
    ref = a_hat @ ref @ w2 + b2
    assert logits.shape == (num_nodes, num_classes)
    assert jnp.allclose(logits, ref, atol=3e-2, rtol=3e-2), float(
        jnp.max(jnp.abs(logits - ref)))

    print("KERNEL_OK")
</pallas_src>

<mosaic_0001>
module attributes {stable_mosaic.version = 11 : i64} {
  func.func @_k(%arg0: i32, %arg1: memref<8x128xf32, #tpu.memory_space<vmem>>, %arg2: memref<8x128xf32, #tpu.memory_space<vmem>>) attributes {dimension_semantics = [#tpu.dimension_semantics<arbitrary>], iteration_bounds = array<i64: 2>, scalar_prefetch = 0 : i64, scratch_operands = 0 : i64, tpu.core_type = #tpu.core_type<tc>, window_params = [{pipeline_mode = #tpu.pipeline_mode<synchronous>, transform_indices = @transform_0, window_bounds = array<i64: 8, 128>}, {pipeline_mode = #tpu.pipeline_mode<synchronous>, transform_indices = @transform_1, window_bounds = array<i64: 8, 128>}]} {
    %c0 = arith.constant 0 : index
    %c0_0 = arith.constant 0 : index
    %0 = vector.load %arg1[%c0, %c0_0] : memref<8x128xf32, #tpu.memory_space<vmem>>, vector<8x128xf32>
    %cst = arith.constant 1.000000e+00 : f32
    %1 = vector.broadcast %cst : f32 to vector<8x128xf32>
    %2 = arith.addf %0, %1 : vector<8x128xf32>
    %c0_1 = arith.constant 0 : index
    %c0_2 = arith.constant 0 : index
    %3 = vector.load %arg2[%c0_1, %c0_2] : memref<8x128xf32, #tpu.memory_space<vmem>>, vector<8x128xf32>
    tpu.vector_store %arg2[%c0_1, %c0_2], %2 {strides = array<i32>} : memref<8x128xf32, #tpu.memory_space<vmem>>, vector<8x128xf32>,
    return
  }
  func.func @transform_0(%arg0: i32) -> (i32, i32) {
    %c0_i32 = arith.constant 0 : i32
    %c0_i32_0 = arith.constant 0 : i32
    %c0_i32_1 = arith.constant 0 : i32
    return %c0_i32, %c0_i32_0 : i32, i32
  }
  func.func @transform_1(%arg0: i32) -> (i32, i32) {
    %c0_i32 = arith.constant 0 : i32
    %c0_i32_0 = arith.constant 0 : i32
    %c0_i32_1 = arith.constant 0 : i32
    return %c0_i32, %c0_i32_0 : i32, i32
  }
}

module attributes {stable_mosaic.version = 11 : i64} {
  func.func @fused_gcn_kernel(%arg0: i32, %arg1: i32, %arg2: memref<128x256xbf16, #tpu.memory_space<vmem>>, %arg3: memref<256x128xbf16, #tpu.memory_space<vmem>>, %arg4: memref<1x128xf32, #tpu.memory_space<vmem>>, %arg5: memref<128x128xbf16, #tpu.memory_space<vmem>>, %arg6: memref<1x256x128xf32, #tpu.memory_space<vmem>>) attributes {dimension_semantics = [#tpu.dimension_semantics<parallel>, #tpu.dimension_semantics<arbitrary>], iteration_bounds = array<i64: 2, 1>, scalar_prefetch = 0 : i64, scratch_operands = 0 : i64, tpu.core_type = #tpu.core_type<tc>, window_params = [{transform_indices = @transform_0, window_bounds = array<i64: 128, 256>}, {pipeline_mode = #tpu.pipeline_mode<synchronous>, transform_indices = @transform_1, window_bounds = array<i64: 256, 128>}, {pipeline_mode = #tpu.pipeline_mode<synchronous>, transform_indices = @transform_2, window_bounds = array<i64: 1, 128>}, {pipeline_mode = #tpu.pipeline_mode<synchronous>, transform_indices = @transform_3, window_bounds = array<i64: 128, 128>}, {transform_indices = @transform_4, window_bounds = array<i64: 1, 256, 128>}]} {
    %c0_i32 = arith.constant 0 : i32
    %0 = arith.cmpi eq, %arg1, %c0_i32 : i32
    %1 = arith.extui %0 : i1 to i32
    %c0_i32_0 = arith.constant 0 : i32
    %2 = arith.cmpi ne, %1, %c0_i32_0 : i32
    scf.if %2 {
      %cst_17 = arith.constant 0.000000e+00 : f32
      %20 = vector.broadcast %cst_17 : f32 to vector<1x256x128xf32>
      %c0_18 = arith.constant 0 : index
      %c0_19 = arith.constant 0 : index
      %c0_20 = arith.constant 0 : index
      %21 = vector.load %arg6[%c0_18, %c0_19, %c0_20] : memref<1x256x128xf32, #tpu.memory_space<vmem>>, vector<1x256x128xf32>
      tpu.vector_store %arg6[%c0_18, %c0_19, %c0_20], %20 {strides = array<i32>} : memref<1x256x128xf32, #tpu.memory_space<vmem>>, vector<1x256x128xf32>,
    } else {
    }
    %c0 = arith.constant 0 : index
    %c0_1 = arith.constant 0 : index
    %3 = vector.load %arg2[%c0, %c0_1] : memref<128x256xbf16, #tpu.memory_space<vmem>>, vector<128x256xbf16>
    %c0_2 = arith.constant 0 : index
    %c0_3 = arith.constant 0 : index
    %4 = vector.load %arg3[%c0_2, %c0_3] : memref<256x128xbf16, #tpu.memory_space<vmem>>, vector<256x128xbf16>
    %cst = arith.constant dense<0.000000e+00> : vector<128x128xf32>
    %5 = tpu.matmul %3, %4, %cst {dimension_numbers = #tpu.dot_dimension_numbers<[1], [0], [0], [1], [0, 0, 1, 1], [], []>} : vector<128x256xbf16>, vector<256x128xbf16>, vector<128x128xf32> -> vector<128x128xf32>
    %c0_4 = arith.constant 0 : index
    %c0_5 = arith.constant 0 : index
    %6 = vector.load %arg4[%c0_4, %c0_5] : memref<1x128xf32, #tpu.memory_space<vmem>>, vector<1x128xf32>
    %7 = vector.broadcast %6 : vector<1x128xf32> to vector<128x128xf32>
    %8 = arith.addf %5, %7 : vector<128x128xf32>
    %cst_6 = arith.constant 0.000000e+00 : f32
    %9 = vector.broadcast %cst_6 : f32 to vector<128x128xf32>
    %10 = arith.maximumf %8, %9 : vector<128x128xf32>
    %11 = arith.truncf %10 : vector<128x128xf32> to vector<128x128xbf16>
    %c0_7 = arith.constant 0 : index
    %c0_8 = arith.constant 0 : index
    %12 = vector.load %arg5[%c0_7, %c0_8] : memref<128x128xbf16, #tpu.memory_space<vmem>>, vector<128x128xbf16>
    %cst_9 = arith.constant dense<0.000000e+00> : vector<128x128xf32>
    %13 = tpu.matmul %11, %12, %cst_9 {dimension_numbers = #tpu.dot_dimension_numbers<[1], [0], [0], [1], [0, 0, 1, 1], [], []>} : vector<128x128xbf16>, vector<128x128xbf16>, vector<128x128xf32> -> vector<128x128xf32>
    %14 = arith.truncf %13 : vector<128x128xf32> to vector<128x128xbf16>
    %cst_10 = arith.constant dense<0.000000e+00> : vector<256x128xf32>
    %15 = tpu.matmul %3, %14, %cst_10 {dimension_numbers = #tpu.dot_dimension_numbers<[0], [0], [1], [1], [0, 1, 1, 1], [], []>} : vector<128x256xbf16>, vector<128x128xbf16>, vector<256x128xf32> -> vector<256x128xf32>
    %c0_11 = arith.constant 0 : index
    %c0_12 = arith.constant 0 : index
    %c0_13 = arith.constant 0 : index
    %16 = vector.load %arg6[%c0_11, %c0_12, %c0_13] : memref<1x256x128xf32, #tpu.memory_space<vmem>>, vector<1x256x128xf32>
    %17 = vector.shape_cast %15 : vector<256x128xf32> to vector<1x256x128xf32>
    %18 = arith.addf %16, %17 : vector<1x256x128xf32>
    %c0_14 = arith.constant 0 : index
    %c0_15 = arith.constant 0 : index
    %c0_16 = arith.constant 0 : index
    %19 = vector.load %arg6[%c0_14, %c0_15, %c0_16] : memref<1x256x128xf32, #tpu.memory_space<vmem>>, vector<1x256x128xf32>
    tpu.vector_store %arg6[%c0_14, %c0_15, %c0_16], %18 {strides = array<i32>} : memref<1x256x128xf32, #tpu.memory_space<vmem>>, vector<1x256x128xf32>,
    return
  }
  func.func @transform_0(%arg0: i32, %arg1: i32) -> (i32, i32) {
    %c1_i32 = arith.constant 1 : i32
    %0 = arith.muli %arg0, %c1_i32 : i32
    %1 = arith.addi %0, %arg1 : i32
    %c0_i32 = arith.constant 0 : i32
    %c0_i32_0 = arith.constant 0 : i32
    return %1, %c0_i32 : i32, i32
  }
  func.func @transform_1(%arg0: i32, %arg1: i32) -> (i32, i32) {
    %c0_i32 = arith.constant 0 : i32
    %c0_i32_0 = arith.constant 0 : i32
    %c0_i32_1 = arith.constant 0 : i32
    return %c0_i32, %c0_i32_0 : i32, i32
  }
  func.func @transform_2(%arg0: i32, %arg1: i32) -> (i32, i32) {
    %c0_i32 = arith.constant 0 : i32
    %c0_i32_0 = arith.constant 0 : i32
    %c0_i32_1 = arith.constant 0 : i32
    return %c0_i32, %c0_i32_0 : i32, i32
  }
  func.func @transform_3(%arg0: i32, %arg1: i32) -> (i32, i32) {
    %c0_i32 = arith.constant 0 : i32
    %c0_i32_0 = arith.constant 0 : i32
    %c0_i32_1 = arith.constant 0 : i32
    return %c0_i32, %c0_i32_0 : i32, i32
  }
  func.func @transform_4(%arg0: i32, %arg1: i32) -> (i32, i32, i32) {
    %c0_i32 = arith.constant 0 : i32
    %c0_i32_0 = arith.constant 0 : i32
    %c0_i32_1 = arith.constant 0 : i32
    return %arg0, %c0_i32, %c0_i32_0 : i32, i32, i32
  }
}

</mosaic_0001>

<llo_original>
// kernel: tpu_custom_call.1
$region0: #{tpu_custom_call.1}
  #allocation0 [shape = 'u32[]', space=smem, size = 0x4, offset = 0x4, fixed_abs, tag = 'smem constant byte address 0x4 - core index']
  #allocation1 [shape = 'u32[144,128]{1,0:T(1,128)}', space=vmem, size = 0x12000, scoped, tag = 'internal scratch']
  %s0 = inlined_call_operand.hbm [shape: f32[8,128], index: 0, kind: input, shape index: {}]
  %s1 = inlined_call_operand.hbm [shape: f32[8,128], index: 1, kind: output, shape index: {}]
  %s2 = sld [smem:[#allocation0]]
  $region41: #{tpu_custom_call.1} parent=0
    _
  %s4 = ssub.s32 1, %s2
  %s5 = scalar_select 0, %s4, %s2
  $region1: #{tpu_custom_call.1} parent=0
    #allocation2 [shape = 'u8[4096]{0}', space=vmem, size = 0x1000, scoped, tag = 'input window, operand 0, single buffered']
    #allocation3 [shape = 's32[2]{0}', space=sflag, size = 0x8, scoped, tag = 'scoped memory for tpu_custom_call.1']
    #allocation4 [shape = 's32[2]{0}', space=sflag, size = 0x8, scoped, tag = 'scoped memory for tpu_custom_call.1']
    #allocation5 [shape = 'u8[4096]{0}', space=vmem, size = 0x1000, scoped, tag = 'output window, operand 0, single buffered']
    %6 = vsyncpa [#allocation3], 0
    %7 = vsyncpa [#allocation4], 0
    loop: start=0, step=1, limit=4
    $region2: #{tpu_custom_call.1} parent=1 // loop_pre_header
      _
    $region3: #{tpu_custom_call.1} parent=1 // loop_header
      %s9 = sphi 0, %s13
      %p10 = scmp.ge.s32.totalorder %s9, 4
      %s17 = sphi 0, %s17
      %s19 = sphi 0, %s17
      %s20 = sphi 0, %s19
      %s34 = sphi 0, %s20
      %s38 = sphi 0, %s38
      %s40 = sphi 0, %s38
      %s41 = sphi 0, %s40
      %s55 = sphi 0, %s41
    $region4: #{tpu_custom_call.1} parent=1 // loop_header_branch
      %12 = sbr.rel (%p10) target = $region8
    $region5: #{tpu_custom_call.1} parent=1 // loop_body
      %s14 = ssub.s32 %s9, 1
      %s15 = ssub.s32 %s9, 2
      %s16 = sadd.s32 %s9, 1
      %s18 = sadd.s32 %s17, 1
      %p21 = scmp.eq.s32.totalorder %s9, 1
      %p22 = scmp.ne.s32.totalorder %s17, %s19
      %p23 = scmp.eq.s32.totalorder %s9, 0
      %p24 = por %p22, %p23
      %p25 = scmp.ne.s32.totalorder %s17, %s19
      %p26 = scmp.eq.s32.totalorder %s14, 1
      %p27 = por %p25, %p26
      %p28 = scmp.ne.s32.totalorder %s19, %s20
      %p29 = scmp.eq.s32.totalorder %s14, 0
      %p30 = por %p28, %p29
      %p31 = scmp.ne.s32.totalorder %s19, %s20
      %p32 = scmp.eq.s32.totalorder %s15, 1
      %p33 = por %p31, %p32
      %p35 = scmp.ne.s32.totalorder %s20, %s34
      %p36 = scmp.eq.s32.totalorder %s15, 0
      %p37 = por %p35, %p36
      %s39 = sadd.s32 %s38, 1
      %p42 = scmp.eq.s32.totalorder %s9, 1
      %p43 = scmp.ne.s32.totalorder %s38, %s40
      %p44 = scmp.eq.s32.totalorder %s9, 0
      %p45 = por %p43, %p44
      %p46 = scmp.ne.s32.totalorder %s38, %s40
      %p47 = scmp.eq.s32.totalorder %s14, 1
      %p48 = por %p46, %p47
      %p49 = scmp.ne.s32.totalorder %s40, %s41
      %p50 = scmp.eq.s32.totalorder %s14, 0
      %p51 = por %p49, %p50
      %p52 = scmp.ne.s32.totalorder %s40, %s41
      %p53 = scmp.eq.s32.totalorder %s15, 1
      %p54 = por %p52, %p53
      %p56 = scmp.ne.s32.totalorder %s41, %s55
      %p57 = scmp.eq.s32.totalorder %s15, 0
      %p58 = por %p56, %p57
      %p59 = scmp.le.s32.totalorder 1, %s9
      %p60 = scmp.lt.s32.totalorder %s9, 3
      %p61 = pnand %p59, %p60
      %p62 = pneg %p61
      // Predicated region
      $region9: #{tpu_custom_call.1} parent=5 // pred_check
        _
      $region10: #{tpu_custom_call.1} parent=5 // pred_check_branch
        %64 = sbr.rel (%p61) target = $region12
      $region11: #{tpu_custom_call.1} parent=5 // pred_region
        %s65 = ssub.s32 %s9, 1
        // Predicated region
        $region13: #{tpu_custom_call.1} parent=11 // pred_check
          %p66 = pneg %p30
        $region14: #{tpu_custom_call.1} parent=11 // pred_check_branch
          %68 = sbr.rel (%p66) target = $region16
        $region15: #{tpu_custom_call.1} parent=11 // pred_region
          %s70 = ssub.s32 128, 128
          %71 = vsyncadd [#allocation3], %s70
          %s73 = sshll.u32 [#allocation2], 4
          %s74 = int_to_ptr.vmem [resolvable:$true] %s73
          %76 = dma.hbm_to_vmem [thread:$0]  %s0, 128, %s74, [#allocation3]
        $region16: #{tpu_custom_call.1} parent=11 // pred_fallthru
          _
      $region12: #{tpu_custom_call.1} parent=5 // pred_fallthru
        _
      %p77 = scmp.lt.s32.totalorder %s9, 2
      // Predicated region
      $region17: #{tpu_custom_call.1} parent=5 // pred_check
        %p78 = pneg %p77
      $region18: #{tpu_custom_call.1} parent=5 // pred_check_branch
        %80 = sbr.rel (%p78) target = $region20
      $region19: #{tpu_custom_call.1} parent=5 // pred_region
        _
      $region20: #{tpu_custom_call.1} parent=5 // pred_fallthru
        _
      %p81 = scmp.le.s32.totalorder 1, %s9
      %p82 = scmp.lt.s32.totalorder %s9, 3
      %p83 = pnand %p81, %p82
      %p84 = pneg %p83
      // Predicated region
      $region21: #{tpu_custom_call.1} parent=5 // pred_check
        _
      $region22: #{tpu_custom_call.1} parent=5 // pred_check_branch
        %86 = sbr.rel (%p83) target = $region24
      $region23: #{tpu_custom_call.1} parent=5 // pred_region
        %s87 = ssub.s32 %s9, 1
        // Predicated region
        $region25: #{tpu_custom_call.1} parent=23 // pred_check
          %p88 = pneg %p30
        $region26: #{tpu_custom_call.1} parent=23 // pred_check_branch
          %90 = sbr.rel (%p88) target = $region28
        $region27: #{tpu_custom_call.1} parent=23 // pred_region
          %91 = dma.done [#allocation3], 128
        $region28: #{tpu_custom_call.1} parent=23 // pred_fallthru
          _
        %p92 = pneg %p30
        %p93 = pneg %p27
        %p94 = pneg %p51
        %p95 = pneg %p48
        %v96 = vld [vmem:[#allocation2] sm:$0xff]
        %v97 = vadd.f32 %v96, 1.0
        %98 = vst [vmem:[#allocation5] sm:$0xff] %v97
        // Predicated region
        $region29: #{tpu_custom_call.1} parent=23 // pred_check
          %p99 = pneg %p48
        $region30: #{tpu_custom_call.1} parent=23 // pred_check_branch
          %101 = sbr.rel (%p99) target = $region32
        $region31: #{tpu_custom_call.1} parent=23 // pred_region
          %s103 = ssub.s32 128, 128
          %104 = vsyncadd [#allocation4], %s103
          %s106 = sshll.u32 [#allocation5], 4
          %s107 = int_to_ptr.vmem [resolvable:$true] %s106
          %109 = dma.vmem_to_hbm [thread:$0]  %s107, 128, %s1, [#allocation4]
        $region32: #{tpu_custom_call.1} parent=23 // pred_fallthru
          _
        // Predicated region
        $region33: #{tpu_custom_call.1} parent=23 // pred_check
          %p110 = pneg %p48
        $region34: #{tpu_custom_call.1} parent=23 // pred_check_branch
          %112 = sbr.rel (%p110) target = $region36
        $region35: #{tpu_custom_call.1} parent=23 // pred_region
          %113 = dma.done [#allocation4], 128
        $region36: #{tpu_custom_call.1} parent=23 // pred_fallthru
          _
      $region24: #{tpu_custom_call.1} parent=5 // pred_fallthru
        _
      %p114 = scmp.le.s32.totalorder 2, %s9
      // Predicated region
      $region37: #{tpu_custom_call.1} parent=5 // pred_check
        %p115 = pneg %p114
      $region38: #{tpu_custom_call.1} parent=5 // pred_check_branch
        %117 = sbr.rel (%p115) target = $region40
      $region39: #{tpu_custom_call.1} parent=5 // pred_region
        %s118 = ssub.s32 %s9, 2
      $region40: #{tpu_custom_call.1} parent=5 // pred_fallthru
        _
    $region6: #{tpu_custom_call.1} parent=1 // loop_footer
      %s13 = sadd.s32 1, %s9
    $region7: #{tpu_custom_call.1} parent=1 // loop_footer_branch
      %8 = sbr.rel target = $region3
    $region8: #{tpu_custom_call.1} parent=1 // loop_exit
      _
    %119 = vsyncpa [#allocation3], 1
    %s120 = scalar_lea.sflag [#allocation3], 1
    %121 = vsyncpa %s120, 1
    %122 = vsyncpa [#allocation4], 1
    %s123 = scalar_lea.sflag [#allocation4], 1
    %124 = vsyncpa %s123, 1

// kernel: gcn_forward.1
$region0: #{gcn_forward.1}
  #allocation0 [shape = 'u32[]', space=smem, size = 0x4, offset = 0x4, fixed_abs, tag = 'smem constant byte address 0x4 - core index']
  #allocation1 [shape = 'u32[144,128]{1,0:T(1,128)}', space=vmem, size = 0x12000, scoped, tag = 'internal scratch']
  %s0 = inlined_call_operand.vmem [shape: bf16[256,256], index: 0, kind: input, shape index: {}]
  %s1 = inlined_call_operand.vmem [shape: bf16[256,128], index: 1, kind: input, shape index: {}]
  %s2 = inlined_call_operand.vmem [shape: f32[1,128], index: 2, kind: input, shape index: {}]
  %s3 = inlined_call_operand.vmem [shape: bf16[128,128], index: 3, kind: input, shape index: {}]
  %s4 = inlined_call_operand.vmem [shape: f32[2,256,128], index: 4, kind: output, shape index: {}]
  %s5 = sld [smem:[#allocation0]]
  $region53: #{gcn_forward.1} parent=0
    _
  %s7 = ssub.s32 1, %s5
  %s8 = scalar_select 0, %s7, %s5
  loop: start=0, step=1, limit=4
  $region2: #{gcn_forward.1} parent=0 // loop_pre_header
    _
  $region3: #{gcn_forward.1} parent=0 // loop_header
    %s10 = sphi 0, %s14
    %p11 = scmp.ge.s32.totalorder %s10, 4
    %s17 = sphi 0, %s29
    %s18 = sphi 0, %s25
    %s19 = sphi 0, %s17
    %s20 = sphi 0, %s18
    %s21 = sphi 0, %s19
    %s22 = sphi 0, %s20
    %s34 = sphi 0, %s36
    %s37 = sphi 0, %s34
    %s38 = sphi 0, %s37
    %s54 = sphi 0, %s38
    %s58 = sphi 0, %s58
    %s60 = sphi 0, %s58
    %s61 = sphi 0, %s60
    %s75 = sphi 0, %s61
    %s79 = sphi 0, %s79
    %s81 = sphi 0, %s79
    %s82 = sphi 0, %s81
    %s96 = sphi 0, %s82
    %s100 = sphi 0, %s100
    %s102 = sphi 0, %s100
    %s103 = sphi 0, %s102
    %s117 = sphi 0, %s103
    %s123 = sphi 0, %s125
    %s126 = sphi 0, %s123
    %s127 = sphi 0, %s126
    %s143 = sphi 0, %s127
  $region4: #{gcn_forward.1} parent=0 // loop_header_branch
    %13 = sbr.rel (%p11) target = $region8
  $region5: #{gcn_forward.1} parent=0 // loop_body
    %s15 = ssub.s32 %s10, 1
    %s16 = ssub.s32 %s10, 2
    %s23 = sadd.s32 1, %s18
    %p24 = scmp.ge.s32.totalorder %s23, 1
    %s25 = scalar_select %p24, 0, %s23
    %s26 = sadd.s32 1, %s17
    %s27 = scalar_select %p24, %s26, %s17
    %p28 = scmp.ge.s32.totalorder %s27, 2
    %s29 = scalar_select %p28, 0, %s27
    %s30 = sadd.s32 %s17, %s18
    %s31 = sadd.s32 %s29, %s25
    %s32 = ssub.s32 %s30, %s31
    %p33 = scmp.eq.s32.totalorder %s32, 0
    %s35 = sadd.s32 %s34, 1
    %s36 = scalar_select %p33, %s34, %s35
    %p39 = pneg %p33
    %p40 = scmp.eq.s32.totalorder %s10, 1
    %p41 = por %p39, %p40
    %p42 = scmp.ne.s32.totalorder %s34, %s37
    %p43 = scmp.eq.s32.totalorder %s10, 0
    %p44 = por %p42, %p43
    %p45 = scmp.ne.s32.totalorder %s34, %s37
    %p46 = scmp.eq.s32.totalorder %s15, 1
    %p47 = por %p45, %p46
    %p48 = scmp.ne.s32.totalorder %s37, %s38
    %p49 = scmp.eq.s32.totalorder %s15, 0
    %p50 = por %p48, %p49
    %p51 = scmp.ne.s32.totalorder %s37, %s38
    %p52 = scmp.eq.s32.totalorder %s16, 1
    %p53 = por %p51, %p52
    %p55 = scmp.ne.s32.totalorder %s38, %s54
    %p56 = scmp.eq.s32.totalorder %s16, 0
    %p57 = por %p55, %p56
    %s59 = sadd.s32 %s58, 1
    %p62 = scmp.eq.s32.totalorder %s10, 1
    %p63 = scmp.ne.s32.totalorder %s58, %s60
    %p64 = scmp.eq.s32.totalorder %s10, 0
    %p65 = por %p63, %p64
    %p66 = scmp.ne.s32.totalorder %s58, %s60
    %p67 = scmp.eq.s32.totalorder %s15, 1
    %p68 = por %p66, %p67
    %p69 = scmp.ne.s32.totalorder %s60, %s61
    %p70 = scmp.eq.s32.totalorder %s15, 0
    %p71 = por %p69, %p70
    %p72 = scmp.ne.s32.totalorder %s60, %s61
    %p73 = scmp.eq.s32.totalorder %s16, 1
    %p74 = por %p72, %p73
    %p76 = scmp.ne.s32.totalorder %s61, %s75
    %p77 = scmp.eq.s32.totalorder %s16, 0
    %p78 = por %p76, %p77
    %s80 = sadd.s32 %s79, 1
    %p83 = scmp.eq.s32.totalorder %s10, 1
    %p84 = scmp.ne.s32.totalorder %s79, %s81
    %p85 = scmp.eq.s32.totalorder %s10, 0
    %p86 = por %p84, %p85
    %p87 = scmp.ne.s32.totalorder %s79, %s81
    %p88 = scmp.eq.s32.totalorder %s15, 1
    %p89 = por %p87, %p88
    %p90 = scmp.ne.s32.totalorder %s81, %s82
    %p91 = scmp.eq.s32.totalorder %s15, 0
    %p92 = por %p90, %p91
    %p93 = scmp.ne.s32.totalorder %s81, %s82
    %p94 = scmp.eq.s32.totalorder %s16, 1
    %p95 = por %p93, %p94
    %p97 = scmp.ne.s32.totalorder %s82, %s96
    %p98 = scmp.eq.s32.totalorder %s16, 0
    %p99 = por %p97, %p98
    %s101 = sadd.s32 %s100, 1
    %p104 = scmp.eq.s32.totalorder %s10, 1
    %p105 = scmp.ne.s32.totalorder %s100, %s102
    %p106 = scmp.eq.s32.totalorder %s10, 0
    %p107 = por %p105, %p106
    %p108 = scmp.ne.s32.totalorder %s100, %s102
    %p109 = scmp.eq.s32.totalorder %s15, 1
    %p110 = por %p108, %p109
    %p111 = scmp.ne.s32.totalorder %s102, %s103
    %p112 = scmp.eq.s32.totalorder %s15, 0
    %p113 = por %p111, %p112
    %p114 = scmp.ne.s32.totalorder %s102, %s103
    %p115 = scmp.eq.s32.totalorder %s16, 1
    %p116 = por %p114, %p115
    %p118 = scmp.ne.s32.totalorder %s103, %s117
    %p119 = scmp.eq.s32.totalorder %s16, 0
    %p120 = por %p118, %p119
    %s121 = ssub.s32 %s17, %s29
    %p122 = scmp.eq.s32.totalorder %s121, 0
    %s124 = sadd.s32 %s123, 1
    %s125 = scalar_select %p122, %s123, %s124
    %p128 = pneg %p122
    %p129 = scmp.eq.s32.totalorder %s10, 1
    %p130 = por %p128, %p129
    %p131 = scmp.ne.s32.totalorder %s123, %s126
    %p132 = scmp.eq.s32.totalorder %s10, 0
    %p133 = por %p131, %p132
    %p134 = scmp.ne.s32.totalorder %s123, %s126
    %p135 = scmp.eq.s32.totalorder %s15, 1
    %p136 = por %p134, %p135
    %p137 = scmp.ne.s32.totalorder %s126, %s127
    %p138 = scmp.eq.s32.totalorder %s15, 0
    %p139 = por %p137, %p138
    %p140 = scmp.ne.s32.totalorder %s126, %s127
    %p141 = scmp.eq.s32.totalorder %s16, 1
    %p142 = por %p140, %p141
    %p144 = scmp.ne.s32.totalorder %s127, %s143
    %p145 = scmp.eq.s32.totalorder %s16, 0
    %p146 = por %p144, %p145
    %p147 = scmp.le.s32.totalorder 1, %s10
    %p148 = scmp.lt.s32.totalorder %s10, 3
    %p149 = pnand %p147, %p148
    %p150 = pneg %p149
    // Predicated region
    $region9: #{gcn_forward.1} parent=5 // pred_check
      _
    $region10: #{gcn_forward.1} parent=5 // pred_check_branch
      %152 = sbr.rel (%p149) target = $region12
    $region11: #{gcn_forward.1} parent=5 // pred_region
      %s153 = ssub.s32 %s10, 1
      // Predicated region
      $region13: #{gcn_forward.1} parent=11 // pred_check
        %p154 = pneg %p71
      $region14: #{gcn_forward.1} parent=11 // pred_check_branch
        %156 = sbr.rel (%p154) target = $region16
      $region15: #{gcn_forward.1} parent=11 // pred_region
        _
      $region16: #{gcn_forward.1} parent=11 // pred_fallthru
        _
      // Predicated region
      $region17: #{gcn_forward.1} parent=11 // pred_check
        %p157 = pneg %p92
      $region18: #{gcn_forward.1} parent=11 // pred_check_branch
        %159 = sbr.rel (%p157) target = $region20
      $region19: #{gcn_forward.1} parent=11 // pred_region
        _
      $region20: #{gcn_forward.1} parent=11 // pred_fallthru
        _
      // Predicated region
      $region21: #{gcn_forward.1} parent=11 // pred_check
        %p160 = pneg %p113
      $region22: #{gcn_forward.1} parent=11 // pred_check_branch
        %162 = sbr.rel (%p160) target = $region24
      $region23: #{gcn_forward.1} parent=11 // pred_region
        _
      $region24: #{gcn_forward.1} parent=11 // pred_fallthru
        _
    $region12: #{gcn_forward.1} parent=5 // pred_fallthru
      _
    %p163 = scmp.lt.s32.totalorder %s10, 2
    // Predicated region
    $region25: #{gcn_forward.1} parent=5 // pred_check
      %p164 = pneg %p163
    $region26: #{gcn_forward.1} parent=5 // pred_check_branch
      %166 = sbr.rel (%p164) target = $region28
    $region27: #{gcn_forward.1} parent=5 // pred_region
      // Predicated region
      $region29: #{gcn_forward.1} parent=27 // pred_check
        %p167 = pneg %p44
      $region30: #{gcn_forward.1} parent=27 // pred_check_branch
        %169 = sbr.rel (%p167) target = $region32
      $region31: #{gcn_forward.1} parent=27 // pred_region
        %s170 = sadd.s32 %s17, %s18
        %s171 = smul.u32 16, %s170
        %p172 = scmp.lt.s32.totalorder %s171, 31
        %s173 = scalar_select %p172, %s171, 31
        %s174 = smul.addr %s173, 2
        %s175 = smul.addr %s174, 4
        %s176 = scalar_lea.vmem %s0, %s175
        %s177 = sadd.s32 %s17, %s18
        %s178 = smul.u32 16, %s177
      $region32: #{gcn_forward.1} parent=27 // pred_fallthru
        _
    $region28: #{gcn_forward.1} parent=5 // pred_fallthru
      _
    %p179 = scmp.le.s32.totalorder 1, %s10
    %p180 = scmp.lt.s32.totalorder %s10, 3
    %p181 = pnand %p179, %p180
    %p182 = pneg %p181
    // Predicated region
    $region33: #{gcn_forward.1} parent=5 // pred_check
      _
    $region34: #{gcn_forward.1} parent=5 // pred_check_branch
      %184 = sbr.rel (%p181) target = $region36
    $region35: #{gcn_forward.1} parent=5 // pred_region
      %s185 = ssub.s32 %s10, 1
      %s186 = sadd.s32 %s19, %s20
      %s187 = smul.u32 16, %s186
      %p188 = scmp.lt.s32.totalorder %s187, 31
      %s189 = scalar_select %p188, %s187, 31
      %s190 = smul.addr %s189, 2
      %s191 = smul.addr %s190, 4
      %s192 = scalar_lea.vmem %s0, %s191
      %p193 = pneg %p50
      %p194 = pneg %p47
      %p195 = pneg %p71
      %p196 = pneg %p68
      %p197 = pneg %p92
      %p198 = pneg %p89
      %p199 = pneg %p113
      %p200 = pneg %p110
      %p201 = pneg %p139
      %p202 = pneg %p136
      %p203 = scmp.lt.s32.totalorder %s19, 1
      %s204 = scalar_select %p203, %s19, 1
      %s205 = smul.addr %s204, 32
      %s206 = smul.addr %s205, 8
      %s207 = scalar_lea.vmem %s4, %s206
      %s208 = sadd.s32 %s19, %s20
      %s209 = smul.u32 16, %s208
      %p210 = scmp.lt.s32.totalorder %s209, 31
      %s211 = scalar_select %p210, %s209, 31
      %s212 = smul.addr %s211, 2
      %s213 = smul.addr %s212, 4
      %s214 = scalar_lea.vmem %s0, %s213
      %s215 = sadd.s32 %s19, %s20
      %s216 = smul.u32 16, %s215
      %p217 = scmp.lt.s32.totalorder %s19, 1
      %s218 = scalar_select %p217, %s19, 1
      %s219 = smul.addr %s218, 32
      %s220 = smul.addr %s219, 8
      %s221 = scalar_lea.vmem %s4, %s220
      %p223 = scmp.eq.s32.totalorder %s20, 0
      // Predicated region
      $region37: #{gcn_forward.1} parent=35 // pred_check
        %p224 = pneg %p223
      $region38: #{gcn_forward.1} parent=35 // pred_check_branch
        %226 = sbr.rel (%p224) target = $region40
      $region39: #{gcn_forward.1} parent=35 // pred_region
        %227 = vst [vmem:[%s221] sm:$0xff] 0.0
        %228 = vst [vmem:[%s221 + $0x8] sm:$0xff] 0.0
        %229 = vst [vmem:[%s221 + $0x10] sm:$0xff] 0.0
        %230 = vst [vmem:[%s221 + $0x18] sm:$0xff] 0.0
        %231 = vst [vmem:[%s221 + $0x20] sm:$0xff] 0.0
        %232 = vst [vmem:[%s221 + $0x28] sm:$0xff] 0.0
        %233 = vst [vmem:[%s221 + $0x30] sm:$0xff] 0.0
        %234 = vst [vmem:[%s221 + $0x38] sm:$0xff] 0.0
        %235 = vst [vmem:[%s221 + $0x40] sm:$0xff] 0.0
        %236 = vst [vmem:[%s221 + $0x48] sm:$0xff] 0.0
        %237 = vst [vmem:[%s221 + $0x50] sm:$0xff] 0.0
        %238 = vst [vmem:[%s221 + $0x58] sm:$0xff] 0.0
        %239 = vst [vmem:[%s221 + $0x60] sm:$0xff] 0.0
        %240 = vst [vmem:[%s221 + $0x68] sm:$0xff] 0.0
        %241 = vst [vmem:[%s221 + $0x70] sm:$0xff] 0.0
        %242 = vst [vmem:[%s221 + $0x78] sm:$0xff] 0.0
        %243 = vst [vmem:[%s221 + $0x80] sm:$0xff] 0.0
        %244 = vst [vmem:[%s221 + $0x88] sm:$0xff] 0.0
        %245 = vst [vmem:[%s221 + $0x90] sm:$0xff] 0.0
        %246 = vst [vmem:[%s221 + $0x98] sm:$0xff] 0.0
        %247 = vst [vmem:[%s221 + $0xa0] sm:$0xff] 0.0
        %248 = vst [vmem:[%s221 + $0xa8] sm:$0xff] 0.0
        %249 = vst [vmem:[%s221 + $0xb0] sm:$0xff] 0.0
        %250 = vst [vmem:[%s221 + $0xb8] sm:$0xff] 0.0
        %251 = vst [vmem:[%s221 + $0xc0] sm:$0xff] 0.0
        %252 = vst [vmem:[%s221 + $0xc8] sm:$0xff] 0.0
        %253 = vst [vmem:[%s221 + $0xd0] sm:$0xff] 0.0
        %254 = vst [vmem:[%s221 + $0xd8] sm:$0xff] 0.0
        %255 = vst [vmem:[%s221 + $0xe0] sm:$0xff] 0.0
        %256 = vst [vmem:[%s221 + $0xe8] sm:$0xff] 0.0
        %257 = vst [vmem:[%s221 + $0xf0] sm:$0xff] 0.0
        %258 = vst [vmem:[%s221 + $0xf8] sm:$0xff] 0.0
      $region40: #{gcn_forward.1} parent=35 // pred_fallthru
        _
      %v259 = vld [vmem:[%s214] sm:$0xff]
      %v260 = vld [vmem:[%s214 + $0x8] sm:$0xff]
      %v261 = vld [vmem:[%s214 + $0x10] sm:$0xff]
      %v262 = vld [vmem:[%s214 + $0x18] sm:$0xff]
      %v263 = vld [vmem:[%s214 + $0x20] sm:$0xff]
      %v264 = vld [vmem:[%s214 + $0x28] sm:$0xff]
      %v265 = vld [vmem:[%s214 + $0x30] sm:$0xff]
      %v266 = vld [vmem:[%s214 + $0x38] sm:$0xff]
      %v267 = vld [vmem:[%s214 + $0x40] sm:$0xff]
      %v268 = vld [vmem:[%s214 + $0x48] sm:$0xff]
      %v269 = vld [vmem:[%s214 + $0x50] sm:$0xff]
      %v270 = vld [vmem:[%s214 + $0x58] sm:$0xff]
      %v271 = vld [vmem:[%s214 + $0x60] sm:$0xff]
      %v272 = vld [vmem:[%s214 + $0x68] sm:$0xff]
      %v273 = vld [vmem:[%s214 + $0x70] sm:$0xff]
      %v274 = vld [vmem:[%s214 + $0x78] sm:$0xff]
      %v275 = vld [vmem:[%s1] sm:$0xf]
      %v276 = vld [vmem:[%s1 + $0x4] sm:$0xf]
      %v277 = vld [vmem:[%s1 + $0x8] sm:$0xf]
      %v278 = vld [vmem:[%s1 + $0xc] sm:$0xf]
      %v279 = vld [vmem:[%s1 + $0x10] sm:$0xf]
      %v280 = vld [vmem:[%s1 + $0x14] sm:$0xf]
      %v281 = vld [vmem:[%s1 + $0x18] sm:$0xf]
      %v282 = vld [vmem:[%s1 + $0x1c] sm:$0xf]
      %v283 = vld [vmem:[%s1 + $0x20] sm:$0xf]
      %v284 = vld [vmem:[%s1 + $0x24] sm:$0xf]
      %v285 = vld [vmem:[%s1 + $0x28] sm:$0xf]
      %v286 = vld [vmem:[%s1 + $0x2c] sm:$0xf]
      %v287 = vld [vmem:[%s1 + $0x30] sm:$0xf]
      %v288 = vld [vmem:[%s1 + $0x34] sm:$0xf]
      %v289 = vld [vmem:[%s1 + $0x38] sm:$0xf]
      %v290 = vld [vmem:[%s1 + $0x3c] sm:$0xf]
      %v291 = vld [vmem:[%s1 + $0x40] sm:$0xf]
      %v292 = vld [vmem:[%s1 + $0x44] sm:$0xf]
      %v293 = vld [vmem:[%s1 + $0x48] sm:$0xf]
      %v294 = vld [vmem:[%s1 + $0x4c] sm:$0xf]
      %v295 = vld [vmem:[%s1 + $0x50] sm:$0xf]
      %v296 = vld [vmem:[%s1 + $0x54] sm:$0xf]
      %v297 = vld [vmem:[%s1 + $0x58] sm:$0xf]
      %v298 = vld [vmem:[%s1 + $0x5c] sm:$0xf]
      %v299 = vld [vmem:[%s1 + $0x60] sm:$0xf]
      %v300 = vld [vmem:[%s1 + $0x64] sm:$0xf]
      %v301 = vld [vmem:[%s1 + $0x68] sm:$0xf]
      %v302 = vld [vmem:[%s1 + $0x6c] sm:$0xf]
      %v303 = vld [vmem:[%s1 + $0x70] sm:$0xf]
      %v304 = vld [vmem:[%s1 + $0x74] sm:$0xf]
      %v305 = vld [vmem:[%s1 + $0x78] sm:$0xf]
      %v306 = vld [vmem:[%s1 + $0x7c] sm:$0xf]
      %v307 = vld [vmem:[%s2] sm:$0x1]
      %v309 = vlaneseq
      %v310 = vshrl.u32 %v309, 7
      %v311 = vsub.s32 0, %v310
      %v312 = vrot.slane %v307, %v311
      %v330 = vunpack.c.l.b16 %v259
      %v331 = vunpack.c.h.b16 %v259
      %v332 = vunpack.c.l.b16 %v260
      %v333 = vunpack.c.h.b16 %v260
      %v334 = vunpack.c.l.b16 %v261
      %v335 = vunpack.c.h.b16 %v261
      %v336 = vunpack.c.l.b16 %v262
      %v337 = vunpack.c.h.b16 %v262
      %v338 = vunpack.c.l.b16 %v263
      %v339 = vunpack.c.h.b16 %v263
      %v340 = vunpack.c.l.b16 %v264
      %v341 = vunpack.c.h.b16 %v264
      %v342 = vunpack.c.l.b16 %v265
      %v343 = vunpack.c.h.b16 %v265
      %v344 = vunpack.c.l.b16 %v266
      %v345 = vunpack.c.h.b16 %v266
      %v346 = vunpack.c.l.b16 %v267
      %v347 = vunpack.c.h.b16 %v267
      %v348 = vunpack.c.l.b16 %v268
      %v349 = vunpack.c.h.b16 %v268
      %v350 = vunpack.c.l.b16 %v269
      %v351 = vunpack.c.h.b16 %v269
      %v352 = vunpack.c.l.b16 %v270
      %v353 = vunpack.c.h.b16 %v270
      %v354 = vunpack.c.l.b16 %v271
      %v355 = vunpack.c.h.b16 %v271
      %v356 = vunpack.c.l.b16 %v272
      %v357 = vunpack.c.h.b16 %v272
      %v358 = vunpack.c.l.b16 %v273
      %v359 = vunpack.c.h.b16 %v273
      %v360 = vunpack.c.l.b16 %v274
      %v361 = vunpack.c.h.b16 %v274
      %v362 = vpack.c.b16 %v332, %v330
      %v363 = vpack.c.b16 %v333, %v331
      %v364 = vpack.c.b16 %v336, %v334
      %v365 = vpack.c.b16 %v337, %v335
      %v366 = vpack.c.b16 %v340, %v338
      %v367 = vpack.c.b16 %v341, %v339
      %v368 = vpack.c.b16 %v344, %v342
      %v369 = vpack.c.b16 %v345, %v343
      %v370 = vpack.c.b16 %v348, %v346
      %v371 = vpack.c.b16 %v349, %v347
      %v372 = vpack.c.b16 %v352, %v350
      %v373 = vpack.c.b16 %v353, %v351
      %v374 = vpack.c.b16 %v356, %v354
      %v375 = vpack.c.b16 %v357, %v355
      %v376 = vpack.c.b16 %v360, %v358
      %v377 = vpack.c.b16 %v361, %v359
      %v426 = vunpack.c.l.b16 %v275
      %v427 = vunpack.c.l.b16 %v276
      %v428 = vunpack.c.l.b16 %v277
      %v429 = vunpack.c.l.b16 %v278
      %v430 = vunpack.c.l.b16 %v279
      %v431 = vunpack.c.l.b16 %v280
      %v432 = vunpack.c.l.b16 %v281
      %v433 = vunpack.c.l.b16 %v282
      %v434 = vunpack.c.l.b16 %v283
      %v435 = vunpack.c.l.b16 %v284
      %v436 = vunpack.c.l.b16 %v285
      %v437 = vunpack.c.l.b16 %v286
      %v438 = vunpack.c.l.b16 %v287
      %v439 = vunpack.c.l.b16 %v288
      %v440 = vunpack.c.l.b16 %v289
      %v441 = vunpack.c.l.b16 %v290
      %v442 = vunpack.c.l.b16 %v291
      %v443 = vunpack.c.l.b16 %v292
      %v444 = vunpack.c.l.b16 %v293
      %v445 = vunpack.c.l.b16 %v294
      %v446 = vunpack.c.l.b16 %v295
      %v447 = vunpack.c.l.b16 %v296
      %v448 = vunpack.c.l.b16 %v297
      %v449 = vunpack.c.l.b16 %v298
      %v450 = vunpack.c.l.b16 %v299
      %v451 = vunpack.c.l.b16 %v300
      %v452 = vunpack.c.l.b16 %v301
      %v453 = vunpack.c.l.b16 %v302
      %v454 = vunpack.c.l.b16 %v303
      %v455 = vunpack.c.l.b16 %v304
      %v456 = vunpack.c.l.b16 %v305
      %v457 = vunpack.c.l.b16 %v306
      %v458 = vpack.c.b16 %v427, %v426
      %v459 = vpack.c.b16 %v429, %v428
      %v460 = vpack.c.b16 %v431, %v430
      %v461 = vpack.c.b16 %v433, %v432
      %v462 = vpack.c.b16 %v435, %v434
      %v463 = vpack.c.b16 %v437, %v436
      %v464 = vpack.c.b16 %v439, %v438
      %v465 = vpack.c.b16 %v441, %v440
      %v466 = vpack.c.b16 %v443, %v442
      %v467 = vpack.c.b16 %v445, %v444
      %v468 = vpack.c.b16 %v447, %v446
      %v469 = vpack.c.b16 %v449, %v448
      %v470 = vpack.c.b16 %v451, %v450
      %v471 = vpack.c.b16 %v453, %v452
      %v472 = vpack.c.b16 %v455, %v454
      %v473 = vpack.c.b16 %v457, %v456
      %490 = vmatprep.subr.bf16.mxu0 0
      %491 = vmatpush1.bf16.msra.mxu0 %v458
      %492 = vmatprep.subr.bf16.mxu0 0
      %493 = vmatpush1.bf16.msra.mxu0 %v459
      %494 = vmatprep.subr.bf16.mxu0 0
      %495 = vmatpush1.bf16.msra.mxu0 %v460
      %496 = vmatprep.subr.bf16.mxu0 0
      %497 = vmatpush1.bf16.msra.mxu0 %v461
      %498 = vmatprep.subr.bf16.mxu0 0
      %499 = vmatpush1.bf16.msra.mxu0 %v462
      %500 = vmatprep.subr.bf16.mxu0 0
      %501 = vmatpush1.bf16.msra.mxu0 %v463
      %502 = vmatprep.subr.bf16.mxu0 0
      %503 = vmatpush1.bf16.msra.mxu0 %v464
      %504 = vmatprep.subr.bf16.mxu0 0
      %505 = vmatpush1.bf16.msra.mxu0 %v465
      %506 = vmatprep.subr.bf16.mxu0 0
      %507 = vmatpush1.bf16.msra.mxu0 %v466
      %508 = vmatprep.subr.bf16.mxu0 0
      %509 = vmatpush1.bf16.msra.mxu0 %v467
      %510 = vmatprep.subr.bf16.mxu0 0
      %511 = vmatpush1.bf16.msra.mxu0 %v468
      %512 = vmatprep.subr.bf16.mxu0 0
      %513 = vmatpush1.bf16.msra.mxu0 %v469
      %514 = vmatprep.subr.bf16.mxu0 0
      %515 = vmatpush1.bf16.msra.mxu0 %v470
      %516 = vmatprep.subr.bf16.mxu0 0
      %517 = vmatpush1.bf16.msra.mxu0 %v471
      %518 = vmatprep.subr.bf16.mxu0 0
      %519 = vmatpush1.bf16.msra.mxu0 %v472
      %520 = vmatprep.subr.bf16.mxu0 0
      %521 = vmatpush1.bf16.msra.mxu0 %v473
      %522 = vmatprep.mubr.bf16.mxu0 %v363
      %523 = vmatmul.mubr.bf16.gmra.mrb[0].mxu0 %v362
      %v524 = vpop.f32.mrb[0].mxu0
      %v525 = vadd.f32 %v312, %v524
      %v526 = vpop.f32.mrb[0].mxu0
      %v527 = vpop.f32.mrb[0].mxu0
      %v528 = vadd.f32 %v312, %v527
      %v529 = vpop.f32.mrb[0].mxu0
      %530 = vmatprep.mubr.bf16.mxu0 %v365
      %531 = vmatmul.mubr.bf16.gmra.mrb[0].mxu0 %v364
      %v532 = vpop.f32.mrb[0].mxu0
      %v533 = vadd.f32 %v312, %v532
      %v534 = vpop.f32.mrb[0].mxu0
      %v535 = vpop.f32.mrb[0].mxu0
      %v536 = vadd.f32 %v312, %v535
      %v537 = vpop.f32.mrb[0].mxu0
      %538 = vmatprep.mubr.bf16.mxu0 %v367
      %539 = vmatmul.mubr.bf16.gmra.mrb[0].mxu0 %v366
      %v540 = vpop.f32.mrb[0].mxu0
      %v541 = vadd.f32 %v312, %v540
      %v542 = vpop.f32.mrb[0].mxu0
      %v543 = vpop.f32.mrb[0].mxu0
      %v544 = vadd.f32 %v312, %v543
      %v545 = vpop.f32.mrb[0].mxu0
      %546 = vmatprep.mubr.bf16.mxu0 %v369
      %547 = vmatmul.mubr.bf16.gmra.mrb[0].mxu0 %v368
      %v548 = vpop.f32.mrb[0].mxu0
      %v549 = vadd.f32 %v312, %v548
      %v550 = vpop.f32.mrb[0].mxu0
      %v551 = vpop.f32.mrb[0].mxu0
      %v552 = vadd.f32 %v312, %v551
      %v553 = vpop.f32.mrb[0].mxu0
      %554 = vmatprep.mubr.bf16.mxu0 %v371
      %555 = vmatmul.mubr.bf16.gmra.mrb[0].mxu0 %v370
      %v556 = vpop.f32.mrb[0].mxu0
      %v557 = vadd.f32 %v312, %v556
      %v558 = vpop.f32.mrb[0].mxu0
      %v559 = vpop.f32.mrb[0].mxu0
      %v560 = vadd.f32 %v312, %v559
      %v561 = vpop.f32.mrb[0].mxu0
      %562 = vmatprep.mubr.bf16.mxu0 %v373
      %563 = vmatmul.mubr.bf16.gmra.mrb[0].mxu0 %v372
      %v564 = vpop.f32.mrb[0].mxu0
      %v565 = vadd.f32 %v312, %v564
      %v566 = vpop.f32.mrb[0].mxu0
      %v567 = vpop.f32.mrb[0].mxu0
      %v568 = vadd.f32 %v312, %v567
      %v569 = vpop.f32.mrb[0].mxu0
      %570 = vmatprep.mubr.bf16.mxu0 %v375
      %571 = vmatmul.mubr.bf16.gmra.mrb[0].mxu0 %v374
      %v572 = vpop.f32.mrb[0].mxu0
      %v573 = vadd.f32 %v312, %v572
      %v574 = vpop.f32.mrb[0].mxu0
      %v575 = vpop.f32.mrb[0].mxu0
      %v576 = vadd.f32 %v312, %v575
      %v577 = vpop.f32.mrb[0].mxu0
      %578 = vmatprep.mubr.bf16.mxu0 %v377
      %579 = vmatmul.mubr.bf16.gmra.mrb[0].mxu0 %v376
      %v580 = vpop.f32.mrb[0].mxu0
      %v581 = vadd.f32 %v312, %v580
      %v582 = vpop.f32.mrb[0].mxu0
      %v583 = vpop.f32.mrb[0].mxu0
      %v584 = vadd.f32 %v312, %v583
      %v585 = vpop.f32.mrb[0].mxu0
      %586 = vdwg.mxu0
      %v587 = vmax.f32 %v525, 0.0
      %v588 = vmax.f32 %v528, 0.0
      %v589 = vmax.f32 %v533, 0.0
      %v590 = vmax.f32 %v536, 0.0
      %v591 = vmax.f32 %v541, 0.0
      %v592 = vmax.f32 %v544, 0.0
      %v593 = vmax.f32 %v549, 0.0
      %v594 = vmax.f32 %v552, 0.0
      %v595 = vmax.f32 %v557, 0.0
      %v596 = vmax.f32 %v560, 0.0
      %v597 = vmax.f32 %v565, 0.0
      %v598 = vmax.f32 %v568, 0.0
      %v599 = vmax.f32 %v573, 0.0
      %v600 = vmax.f32 %v576, 0.0
      %v601 = vmax.f32 %v581, 0.0
      %v602 = vmax.f32 %v584, 0.0
      %v603 = vpack.c.bf16 %v588, %v587
      %v604 = vpack.c.bf16 %v590, %v589
      %v605 = vpack.c.bf16 %v592, %v591
      %v606 = vpack.c.bf16 %v594, %v593
      %v607 = vpack.c.bf16 %v596, %v595
      %v608 = vpack.c.bf16 %v598, %v597
      %v609 = vpack.c.bf16 %v600, %v599
      %v610 = vpack.c.bf16 %v602, %v601
      %v611 = vld [vmem:[%s3] sm:$0xf]
      %v612 = vld [vmem:[%s3 + $0x4] sm:$0xf]
      %v613 = vld [vmem:[%s3 + $0x8] sm:$0xf]
      %v614 = vld [vmem:[%s3 + $0xc] sm:$0xf]
      %v615 = vld [vmem:[%s3 + $0x10] sm:$0xf]
      %v616 = vld [vmem:[%s3 + $0x14] sm:$0xf]
      %v617 = vld [vmem:[%s3 + $0x18] sm:$0xf]
      %v618 = vld [vmem:[%s3 + $0x1c] sm:$0xf]
      %v619 = vld [vmem:[%s3 + $0x20] sm:$0xf]
      %v620 = vld [vmem:[%s3 + $0x24] sm:$0xf]
      %v621 = vld [vmem:[%s3 + $0x28] sm:$0xf]
      %v622 = vld [vmem:[%s3 + $0x2c] sm:$0xf]
      %v623 = vld [vmem:[%s3 + $0x30] sm:$0xf]
      %v624 = vld [vmem:[%s3 + $0x34] sm:$0xf]
      %v625 = vld [vmem:[%s3 + $0x38] sm:$0xf]
      %v626 = vld [vmem:[%s3 + $0x3c] sm:$0xf]
      %v643 = vunpack.c.l.b16 %v611
      %v644 = vunpack.c.l.b16 %v612
      %v645 = vunpack.c.l.b16 %v613
      %v646 = vunpack.c.l.b16 %v614
      %v647 = vunpack.c.l.b16 %v615
      %v648 = vunpack.c.l.b16 %v616
      %v649 = vunpack.c.l.b16 %v617
      %v650 = vunpack.c.l.b16 %v618
      %v651 = vunpack.c.l.b16 %v619
      %v652 = vunpack.c.l.b16 %v620
      %v653 = vunpack.c.l.b16 %v621
      %v654 = vunpack.c.l.b16 %v622
      %v655 = vunpack.c.l.b16 %v623
      %v656 = vunpack.c.l.b16 %v624
      %v657 = vunpack.c.l.b16 %v625
      %v658 = vunpack.c.l.b16 %v626
      %v659 = vpack.c.b16 %v644, %v643
      %v660 = vpack.c.b16 %v646, %v645
      %v661 = vpack.c.b16 %v648, %v647
      %v662 = vpack.c.b16 %v650, %v649
      %v663 = vpack.c.b16 %v652, %v651
      %v664 = vpack.c.b16 %v654, %v653
      %v665 = vpack.c.b16 %v656, %v655
      %v666 = vpack.c.b16 %v658, %v657
      %675 = vmatprep.subr.bf16.mxu0 0
      %676 = vmatpush1.bf16.msra.mxu0 %v659
      %677 = vmatprep.subr.bf16.mxu0 0
      %678 = vmatpush1.bf16.msra.mxu0 %v660
      %679 = vmatprep.subr.bf16.mxu0 0
      %680 = vmatpush1.bf16.msra.mxu0 %v661
      %681 = vmatprep.subr.bf16.mxu0 0
      %682 = vmatpush1.bf16.msra.mxu0 %v662
      %683 = vmatprep.subr.bf16.mxu0 0
      %684 = vmatpush1.bf16.msra.mxu0 %v663
      %685 = vmatprep.subr.bf16.mxu0 0
      %686 = vmatpush1.bf16.msra.mxu0 %v664
      %687 = vmatprep.subr.bf16.mxu0 0
      %688 = vmatpush1.bf16.msra.mxu0 %v665
      %689 = vmatprep.subr.bf16.mxu0 0
      %690 = vmatpush1.bf16.msra.mxu0 %v666
      %691 = vmatprep.subr.bf16.mxu0 0
      %692 = vmatpush1.bf16.msra.mxu0 0
      %693 = vmatprep.subr.bf16.mxu0 0
      %694 = vmatpush1.bf16.msra.mxu0 0
      %695 = vmatprep.subr.bf16.mxu0 0
      %696 = vmatpush1.bf16.msra.mxu0 0
      %697 = vmatprep.subr.bf16.mxu0 0
      %698 = vmatpush1.bf16.msra.mxu0 0
      %699 = vmatprep.subr.bf16.mxu0 0
      %700 = vmatpush1.bf16.msra.mxu0 0
      %701 = vmatprep.subr.bf16.mxu0 0
      %702 = vmatpush1.bf16.msra.mxu0 0
      %703 = vmatprep.subr.bf16.mxu0 0
      %704 = vmatpush1.bf16.msra.mxu0 0
      %705 = vmatprep.subr.bf16.mxu0 0
      %706 = vmatpush1.bf16.msra.mxu0 0
      %707 = vmatprep.mubr.bf16.mxu0 0
      %708 = vmatmul.mubr.bf16.gmra.mrb[0].mxu0 %v603
      %v709 = vpop.f32.mrb[0].mxu0
      %v710 = vadd.f32 0.0, %v709
      %v711 = vpop.f32.mrb[0].mxu0
      %v712 = vpop.f32.mrb[0].mxu0
      %v713 = vadd.f32 0.0, %v712
      %v714 = vpop.f32.mrb[0].mxu0
      %715 = vmatprep.mubr.bf16.mxu0 0
      %716 = vmatmul.mubr.bf16.gmra.mrb[0].mxu0 %v604
      %v717 = vpop.f32.mrb[0].mxu0
      %v718 = vadd.f32 0.0, %v717
      %v719 = vpop.f32.mrb[0].mxu0
      %v720 = vpop.f32.mrb[0].mxu0
      %v721 = vadd.f32 0.0, %v720
      %v722 = vpop.f32.mrb[0].mxu0
      %723 = vmatprep.mubr.bf16.mxu0 0
      %724 = vmatmul.mubr.bf16.gmra.mrb[0].mxu0 %v605
      %v725 = vpop.f32.mrb[0].mxu0
      %v726 = vadd.f32 0.0, %v725
      %v727 = vpop.f32.mrb[0].mxu0
      %v728 = vpop.f32.mrb[0].mxu0
      %v729 = vadd.f32 0.0, %v728
      %v730 = vpop.f32.mrb[0].mxu0
      %731 = vmatprep.mubr.bf16.mxu0 0
      %732 = vmatmul.mubr.bf16.gmra.mrb[0].mxu0 %v606
      %v733 = vpop.f32.mrb[0].mxu0
      %v734 = vadd.f32 0.0, %v733
      %v735 = vpop.f32.mrb[0].mxu0
      %v736 = vpop.f32.mrb[0].mxu0
      %v737 = vadd.f32 0.0, %v736
      %v738 = vpop.f32.mrb[0].mxu0
      %739 = vmatprep.mubr.bf16.mxu0 0
      %740 = vmatmul.mubr.bf16.gmra.mrb[0].mxu0 %v607
      %v741 = vpop.f32.mrb[0].mxu0
      %v742 = vadd.f32 0.0, %v741
      %v743 = vpop.f32.mrb[0].mxu0
      %v744 = vpop.f32.mrb[0].mxu0
      %v745 = vadd.f32 0.0, %v744
      %v746 = vpop.f32.mrb[0].mxu0
      %747 = vmatprep.mubr.bf16.mxu0 0
      %748 = vmatmul.mubr.bf16.gmra.mrb[0].mxu0 %v608
      %v749 = vpop.f32.mrb[0].mxu0
      %v750 = vadd.f32 0.0, %v749
      %v751 = vpop.f32.mrb[0].mxu0
      %v752 = vpop.f32.mrb[0].mxu0
      %v753 = vadd.f32 0.0, %v752
      %v754 = vpop.f32.mrb[0].mxu0
      %755 = vmatprep.mubr.bf16.mxu0 0
      %756 = vmatmul.mubr.bf16.gmra.mrb[0].mxu0 %v609
      %v757 = vpop.f32.mrb[0].mxu0
      %v758 = vadd.f32 0.0, %v757
      %v759 = vpop.f32.mrb[0].mxu0
      %v760 = vpop.f32.mrb[0].mxu0
      %v761 = vadd.f32 0.0, %v760
      %v762 = vpop.f32.mrb[0].mxu0
      %763 = vmatprep.mubr.bf16.mxu0 0
      %764 = vmatmul.mubr.bf16.gmra.mrb[0].mxu0 %v610
      %v765 = vpop.f32.mrb[0].mxu0
      %v766 = vadd.f32 0.0, %v765
      %v767 = vpop.f32.mrb[0].mxu0
      %v768 = vpop.f32.mrb[0].mxu0
      %v769 = vadd.f32 0.0, %v768
      %v770 = vpop.f32.mrb[0].mxu0
      %771 = vdwg.mxu0
      %v772 = vpack.c.bf16 %v713, %v710
      %v773 = vpack.c.bf16 %v721, %v718
      %v774 = vpack.c.bf16 %v729, %v726
      %v775 = vpack.c.bf16 %v737, %v734
      %v776 = vpack.c.bf16 %v745, %v742
      %v777 = vpack.c.bf16 %v753, %v750
      %v778 = vpack.c.bf16 %v761, %v758
      %v779 = vpack.c.bf16 %v769, %v766
      %780 = vxpose.xlu0.c.b16.start [1/8] %v362, 128
      %781 = vxpose.xlu0.c.b16.cont [2/8] %v364, 128
      %782 = vxpose.xlu0.c.b16.cont [3/8] %v366, 128
      %783 = vxpose.xlu0.c.b16.cont [4/8] %v368, 128
      %784 = vxpose.xlu0.c.b16.cont [5/8] %v370, 128
      %785 = vxpose.xlu0.c.b16.cont [6/8] %v372, 128
      %786 = vxpose.xlu0.c.b16.cont [7/8] %v374, 128
      %787 = vxpose.xlu0.c.b16.end [8/8] %v376, 128
      %v788 = vpop.trf.xlu0
      %v789 = vpop.trf.xlu0
      %v790 = vpop.trf.xlu0
      %v791 = vpop.trf.xlu0
      %v792 = vpop.trf.xlu0
      %v793 = vpop.trf.xlu0
      %v794 = vpop.trf.xlu0
      %v795 = vpop.trf.xlu0
      %796 = vxpose.xlu0.c.b16.start [1/8] %v363, 128
      %797 = vxpose.xlu0.c.b16.cont [2/8] %v365, 128
      %798 = vxpose.xlu0.c.b16.cont [3/8] %v367, 128
      %799 = vxpose.xlu0.c.b16.cont [4/8] %v369, 128
      %800 = vxpose.xlu0.c.b16.cont [5/8] %v371, 128
      %801 = vxpose.xlu0.c.b16.cont [6/8] %v373, 128
      %802 = vxpose.xlu0.c.b16.cont [7/8] %v375, 128
      %803 = vxpose.xlu0.c.b16.end [8/8] %v377, 128
      %v804 = vpop.trf.xlu0
      %v805 = vpop.trf.xlu0
      %v806 = vpop.trf.xlu0
      %v807 = vpop.trf.xlu0
      %v808 = vpop.trf.xlu0
      %v809 = vpop.trf.xlu0
      %v810 = vpop.trf.xlu0
      %v811 = vpop.trf.xlu0
      %812 = vmatprep.subr.bf16.mxu0 0
      %813 = vmatpush1.bf16.msra.mxu0 %v772
      %814 = vmatprep.subr.bf16.mxu0 0
      %815 = vmatpush1.bf16.msra.mxu0 %v773
      %816 = vmatprep.subr.bf16.mxu0 0
      %817 = vmatpush1.bf16.msra.mxu0 %v774
      %818 = vmatprep.subr.bf16.mxu0 0
      %819 = vmatpush1.bf16.msra.mxu0 %v775
      %820 = vmatprep.subr.bf16.mxu0 0
      %821 = vmatpush1.bf16.msra.mxu0 %v776
      %822 = vmatprep.subr.bf16.mxu0 0
      %823 = vmatpush1.bf16.msra.mxu0 %v777
      %824 = vmatprep.subr.bf16.mxu0 0
      %825 = vmatpush1.bf16.msra.mxu0 %v778
      %826 = vmatprep.subr.bf16.mxu0 0
      %827 = vmatpush1.bf16.msra.mxu0 %v779
      %828 = vmatprep.subr.bf16.mxu0 0
      %829 = vmatpush1.bf16.msra.mxu0 0
      %830 = vmatprep.subr.bf16.mxu0 0
      %831 = vmatpush1.bf16.msra.mxu0 0
      %832 = vmatprep.subr.bf16.mxu0 0
      %833 = vmatpush1.bf16.msra.mxu0 0
      %834 = vmatprep.subr.bf16.mxu0 0
      %835 = vmatpush1.bf16.msra.mxu0 0
      %836 = vmatprep.subr.bf16.mxu0 0
      %837 = vmatpush1.bf16.msra.mxu0 0
      %838 = vmatprep.subr.bf16.mxu0 0
      %839 = vmatpush1.bf16.msra.mxu0 0
      %840 = vmatprep.subr.bf16.mxu0 0
      %841 = vmatpush1.bf16.msra.mxu0 0
      %842 = vmatprep.subr.bf16.mxu0 0
      %843 = vmatpush1.bf16.msra.mxu0 0
      %844 = vmatprep.mubr.bf16.mxu0 0
      %845 = vmatmul.mubr.bf16.gmra.mrb[0].mxu0 %v788
      %v846 = vpop.f32.mrb[0].mxu0
      %v847 = vadd.f32 0.0, %v846
      %v848 = vpop.f32.mrb[0].mxu0
      %v849 = vpop.f32.mrb[0].mxu0
      %v850 = vadd.f32 0.0, %v849
      %v851 = vpop.f32.mrb[0].mxu0
      %852 = vmatprep.mubr.bf16.mxu0 0
      %853 = vmatmul.mubr.bf16.gmra.mrb[0].mxu0 %v789
      %v854 = vpop.f32.mrb[0].mxu0
      %v855 = vadd.f32 0.0, %v854
      %v856 = vpop.f32.mrb[0].mxu0
      %v857 = vpop.f32.mrb[0].mxu0
      %v858 = vadd.f32 0.0, %v857
      %v859 = vpop.f32.mrb[0].mxu0
      %860 = vmatprep.mubr.bf16.mxu0 0
      %861 = vmatmul.mubr.bf16.gmra.mrb[0].mxu0 %v790
      %v862 = vpop.f32.mrb[0].mxu0
      %v863 = vadd.f32 0.0, %v862
      %v864 = vpop.f32.mrb[0].mxu0
      %v865 = vpop.f32.mrb[0].mxu0
      %v866 = vadd.f32 0.0, %v865
      %v867 = vpop.f32.mrb[0].mxu0
      %868 = vmatprep.mubr.bf16.mxu0 0
      %869 = vmatmul.mubr.bf16.gmra.mrb[0].mxu0 %v791
      %v870 = vpop.f32.mrb[0].mxu0
      %v871 = vadd.f32 0.0, %v870
      %v872 = vpop.f32.mrb[0].mxu0
      %v873 = vpop.f32.mrb[0].mxu0
      %v874 = vadd.f32 0.0, %v873
      %v875 = vpop.f32.mrb[0].mxu0
      %876 = vmatprep.mubr.bf16.mxu0 0
      %877 = vmatmul.mubr.bf16.gmra.mrb[0].mxu0 %v792
      %v878 = vpop.f32.mrb[0].mxu0
      %v879 = vadd.f32 0.0, %v878
      %v880 = vpop.f32.mrb[0].mxu0
      %v881 = vpop.f32.mrb[0].mxu0
      %v882 = vadd.f32 0.0, %v881
      %v883 = vpop.f32.mrb[0].mxu0
      %884 = vmatprep.mubr.bf16.mxu0 0
      %885 = vmatmul.mubr.bf16.gmra.mrb[0].mxu0 %v793
      %v886 = vpop.f32.mrb[0].mxu0
      %v887 = vadd.f32 0.0, %v886
      %v888 = vpop.f32.mrb[0].mxu0
      %v889 = vpop.f32.mrb[0].mxu0
      %v890 = vadd.f32 0.0, %v889
      %v891 = vpop.f32.mrb[0].mxu0
      %892 = vmatprep.mubr.bf16.mxu0 0
      %893 = vmatmul.mubr.bf16.gmra.mrb[0].mxu0 %v794
      %v894 = vpop.f32.mrb[0].mxu0
      %v895 = vadd.f32 0.0, %v894
      %v896 = vpop.f32.mrb[0].mxu0
      %v897 = vpop.f32.mrb[0].mxu0
      %v898 = vadd.f32 0.0, %v897
      %v899 = vpop.f32.mrb[0].mxu0
      %900 = vmatprep.mubr.bf16.mxu0 0
      %901 = vmatmul.mubr.bf16.gmra.mrb[0].mxu0 %v795
      %v902 = vpop.f32.mrb[0].mxu0
      %v903 = vadd.f32 0.0, %v902
      %v904 = vpop.f32.mrb[0].mxu0
      %v905 = vpop.f32.mrb[0].mxu0
      %v906 = vadd.f32 0.0, %v905
      %v907 = vpop.f32.mrb[0].mxu0
      %908 = vmatprep.mubr.bf16.mxu0 0
      %909 = vmatmul.mubr.bf16.gmra.mrb[0].mxu0 %v804
      %v910 = vpop.f32.mrb[0].mxu0
      %v911 = vadd.f32 0.0, %v910
      %v912 = vpop.f32.mrb[0].mxu0
      %v913 = vpop.f32.mrb[0].mxu0
      %v914 = vadd.f32 0.0, %v913
      %v915 = vpop.f32.mrb[0].mxu0
      %916 = vmatprep.mubr.bf16.mxu0 0
      %917 = vmatmul.mubr.bf16.gmra.mrb[0].mxu0 %v805
      %v918 = vpop.f32.mrb[0].mxu0
      %v919 = vadd.f32 0.0, %v918
      %v920 = vpop.f32.mrb[0].mxu0
      %v921 = vpop.f32.mrb[0].mxu0
      %v922 = vadd.f32 0.0, %v921
      %v923 = vpop.f32.mrb[0].mxu0
      %924 = vmatprep.mubr.bf16.mxu0 0
      %925 = vmatmul.mubr.bf16.gmra.mrb[0].mxu0 %v806
      %v926 = vpop.f32.mrb[0].mxu0
      %v927 = vadd.f32 0.0, %v926
      %v928 = vpop.f32.mrb[0].mxu0
      %v929 = vpop.f32.mrb[0].mxu0
      %v930 = vadd.f32 0.0, %v929
      %v931 = vpop.f32.mrb[0].mxu0
      %932 = vmatprep.mubr.bf16.mxu0 0
      %933 = vmatmul.mubr.bf16.gmra.mrb[0].mxu0 %v807
      %v934 = vpop.f32.mrb[0].mxu0
      %v935 = vadd.f32 0.0, %v934
      %v936 = vpop.f32.mrb[0].mxu0
      %v937 = vpop.f32.mrb[0].mxu0
      %v938 = vadd.f32 0.0, %v937
      %v939 = vpop.f32.mrb[0].mxu0
      %940 = vmatprep.mubr.bf16.mxu0 0
      %941 = vmatmul.mubr.bf16.gmra.mrb[0].mxu0 %v808
      %v942 = vpop.f32.mrb[0].mxu0
      %v943 = vadd.f32 0.0, %v942
      %v944 = vpop.f32.mrb[0].mxu0
      %v945 = vpop.f32.mrb[0].mxu0
      %v946 = vadd.f32 0.0, %v945
      %v947 = vpop.f32.mrb[0].mxu0
      %948 = vmatprep.mubr.bf16.mxu0 0
      %949 = vmatmul.mubr.bf16.gmra.mrb[0].mxu0 %v809
      %v950 = vpop.f32.mrb[0].mxu0
      %v951 = vadd.f32 0.0, %v950
      %v952 = vpop.f32.mrb[0].mxu0
      %v953 = vpop.f32.mrb[0].mxu0
      %v954 = vadd.f32 0.0, %v953
      %v955 = vpop.f32.mrb[0].mxu0
      %956 = vmatprep.mubr.bf16.mxu0 0
      %957 = vmatmul.mubr.bf16.gmra.mrb[0].mxu0 %v810
      %v958 = vpop.f32.mrb[0].mxu0
      %v959 = vadd.f32 0.0, %v958
      %v960 = vpop.f32.mrb[0].mxu0
      %v961 = vpop.f32.mrb[0].mxu0
      %v962 = vadd.f32 0.0, %v961
      %v963 = vpop.f32.mrb[0].mxu0
      %964 = vmatprep.mubr.bf16.mxu0 0
      %965 = vmatmul.mubr.bf16.gmra.mrb[0].mxu0 %v811
      %v966 = vpop.f32.mrb[0].mxu0
      %v967 = vadd.f32 0.0, %v966
      %v968 = vpop.f32.mrb[0].mxu0
      %v969 = vpop.f32.mrb[0].mxu0
      %v970 = vadd.f32 0.0, %v969
      %v971 = vpop.f32.mrb[0].mxu0
      %972 = vdwg.mxu0
      %v973 = vld [vmem:[%s221] sm:$0xff]
      %v974 = vld [vmem:[%s221 + $0x8] sm:$0xff]
      %v975 = vld [vmem:[%s221 + $0x10] sm:$0xff]
      %v976 = vld [vmem:[%s221 + $0x18] sm:$0xff]
      %v977 = vld [vmem:[%s221 + $0x20] sm:$0xff]
      %v978 = vld [vmem:[%s221 + $0x28] sm:$0xff]
      %v979 = vld [vmem:[%s221 + $0x30] sm:$0xff]
      %v980 = vld [vmem:[%s221 + $0x38] sm:$0xff]
      %v981 = vld [vmem:[%s221 + $0x40] sm:$0xff]
      %v982 = vld [vmem:[%s221 + $0x48] sm:$0xff]
      %v983 = vld [vmem:[%s221 + $0x50] sm:$0xff]
      %v984 = vld [vmem:[%s221 + $0x58] sm:$0xff]
      %v985 = vld [vmem:[%s221 + $0x60] sm:$0xff]
      %v986 = vld [vmem:[%s221 + $0x68] sm:$0xff]
      %v987 = vld [vmem:[%s221 + $0x70] sm:$0xff]
      %v988 = vld [vmem:[%s221 + $0x78] sm:$0xff]
      %v989 = vld [vmem:[%s221 + $0x80] sm:$0xff]
      %v990 = vld [vmem:[%s221 + $0x88] sm:$0xff]
      %v991 = vld [vmem:[%s221 + $0x90] sm:$0xff]
      %v992 = vld [vmem:[%s221 + $0x98] sm:$0xff]
      %v993 = vld [vmem:[%s221 + $0xa0] sm:$0xff]
      %v994 = vld [vmem:[%s221 + $0xa8] sm:$0xff]
      %v995 = vld [vmem:[%s221 + $0xb0] sm:$0xff]
      %v996 = vld [vmem:[%s221 + $0xb8] sm:$0xff]
      %v997 = vld [vmem:[%s221 + $0xc0] sm:$0xff]
      %v998 = vld [vmem:[%s221 + $0xc8] sm:$0xff]
      %v999 = vld [vmem:[%s221 + $0xd0] sm:$0xff]
      %v1000 = vld [vmem:[%s221 + $0xd8] sm:$0xff]
      %v1001 = vld [vmem:[%s221 + $0xe0] sm:$0xff]
      %v1002 = vld [vmem:[%s221 + $0xe8] sm:$0xff]
      %v1003 = vld [vmem:[%s221 + $0xf0] sm:$0xff]
      %v1004 = vld [vmem:[%s221 + $0xf8] sm:$0xff]
      %v1005 = vadd.f32 %v973, %v847
      %v1006 = vadd.f32 %v974, %v850
      %v1007 = vadd.f32 %v975, %v855
      %v1008 = vadd.f32 %v976, %v858
      %v1009 = vadd.f32 %v977, %v863
      %v1010 = vadd.f32 %v978, %v866
      %v1011 = vadd.f32 %v979, %v871
      %v1012 = vadd.f32 %v980, %v874
      %v1013 = vadd.f32 %v981, %v879
      %v1014 = vadd.f32 %v982, %v882
      %v1015 = vadd.f32 %v983, %v887
      %v1016 = vadd.f32 %v984, %v890
      %v1017 = vadd.f32 %v985, %v895
      %v1018 = vadd.f32 %v986, %v898
      %v1019 = vadd.f32 %v987, %v903
      %v1020 = vadd.f32 %v988, %v906
      %v1021 = vadd.f32 %v989, %v911
      %v1022 = vadd.f32 %v990, %v914
      %v1023 = vadd.f32 %v991, %v919
      %v1024 = vadd.f32 %v992, %v922
      %v1025 = vadd.f32 %v993, %v927
      %v1026 = vadd.f32 %v994, %v930
      %v1027 = vadd.f32 %v995, %v935
      %v1028 = vadd.f32 %v996, %v938
      %v1029 = vadd.f32 %v997, %v943
      %v1030 = vadd.f32 %v998, %v946
      %v1031 = vadd.f32 %v999, %v951
      %v1032 = vadd.f32 %v1000, %v954
      %v1033 = vadd.f32 %v1001, %v959
      %v1034 = vadd.f32 %v1002, %v962
      %v1035 = vadd.f32 %v1003, %v967
      %v1036 = vadd.f32 %v1004, %v970
      %1037 = vst [vmem:[%s221] sm:$0xff] %v1005
      %1038 = vst [vmem:[%s221 + $0x8] sm:$0xff] %v1006
      %1039 = vst [vmem:[%s221 + $0x10] sm:$0xff] %v1007
      %1040 = vst [vmem:[%s221 + $0x18] sm:$0xff] %v1008
      %1041 = vst [vmem:[%s221 + $0x20] sm:$0xff] %v1009
      %1042 = vst [vmem:[%s221 + $0x28] sm:$0xff] %v1010
      %1043 = vst [vmem:[%s221 + $0x30] sm:$0xff] %v1011
      %1044 = vst [vmem:[%s221 + $0x38] sm:$0xff] %v1012
      %1045 = vst [vmem:[%s221 + $0x40] sm:$0xff] %v1013
      %1046 = vst [vmem:[%s221 + $0x48] sm:$0xff] %v1014
      %1047 = vst [vmem:[%s221 + $0x50] sm:$0xff] %v1015
      %1048 = vst [vmem:[%s221 + $0x58] sm:$0xff] %v1016
      %1049 = vst [vmem:[%s221 + $0x60] sm:$0xff] %v1017
      %1050 = vst [vmem:[%s221 + $0x68] sm:$0xff] %v1018
      %1051 = vst [vmem:[%s221 + $0x70] sm:$0xff] %v1019
      %1052 = vst [vmem:[%s221 + $0x78] sm:$0xff] %v1020
      %1053 = vst [vmem:[%s221 + $0x80] sm:$0xff] %v1021
      %1054 = vst [vmem:[%s221 + $0x88] sm:$0xff] %v1022
      %1055 = vst [vmem:[%s221 + $0x90] sm:$0xff] %v1023
      %1056 = vst [vmem:[%s221 + $0x98] sm:$0xff] %v1024
      %1057 = vst [vmem:[%s221 + $0xa0] sm:$0xff] %v1025
      %1058 = vst [vmem:[%s221 + $0xa8] sm:$0xff] %v1026
      %1059 = vst [vmem:[%s221 + $0xb0] sm:$0xff] %v1027
      %1060 = vst [vmem:[%s221 + $0xb8] sm:$0xff] %v1028
      %1061 = vst [vmem:[%s221 + $0xc0] sm:$0xff] %v1029
      %1062 = vst [vmem:[%s221 + $0xc8] sm:$0xff] %v1030
      %1063 = vst [vmem:[%s221 + $0xd0] sm:$0xff] %v1031
      %1064 = vst [vmem:[%s221 + $0xd8] sm:$0xff] %v1032
      %1065 = vst [vmem:[%s221 + $0xe0] sm:$0xff] %v1033
      %1066 = vst [vmem:[%s221 + $0xe8] sm:$0xff] %v1034
      %1067 = vst [vmem:[%s221 + $0xf0] sm:$0xff] %v1035
      %1068 = vst [vmem:[%s221 + $0xf8] sm:$0xff] %v1036
      %p1069 = scmp.lt.s32.totalorder %s19, 1
      %s1070 = scalar_select %p1069, %s19, 1
      %s1071 = smul.addr %s1070, 32
      %s1072 = smul.addr %s1071, 8
      %s1073 = scalar_lea.vmem %s4, %s1072
      // Predicated region
      $region41: #{gcn_forward.1} parent=35 // pred_check
        %p1074 = pneg %p136
      $region42: #{gcn_forward.1} parent=35 // pred_check_branch
        %1076 = sbr.rel (%p1074) target = $region44
      $region43: #{gcn_forward.1} parent=35 // pred_region
        _
      $region44: #{gcn_forward.1} parent=35 // pred_fallthru
        _
    $region36: #{gcn_forward.1} parent=5 // pred_fallthru
      _
    %p1077 = scmp.le.s32.totalorder 2, %s10
    // Predicated region
    $region45: #{gcn_forward.1} parent=5 // pred_check
      %p1078 = pneg %p1077
    $region46: #{gcn_forward.1} parent=5 // pred_check_branch
      %1080 = sbr.rel (%p1078) target = $region48
    $region47: #{gcn_forward.1} parent=5 // pred_region
      %s1081 = ssub.s32 %s10, 2
      // Predicated region
      $region49: #{gcn_forward.1} parent=47 // pred_check
        %p1082 = pneg %p142
      $region50: #{gcn_forward.1} parent=47 // pred_check_branch
        %1084 = sbr.rel (%p1082) target = $region52
      $region51: #{gcn_forward.1} parent=47 // pred_region
        %p1085 = scmp.lt.s32.totalorder %s21, 1
        %s1086 = scalar_select %p1085, %s21, 1
        %s1087 = smul.addr %s1086, 32
        %s1088 = smul.addr %s1087, 8
        %s1089 = scalar_lea.vmem %s4, %s1088
      $region52: #{gcn_forward.1} parent=47 // pred_fallthru
        _
    $region48: #{gcn_forward.1} parent=5 // pred_fallthru
      _
  $region6: #{gcn_forward.1} parent=0 // loop_footer
    %s14 = sadd.s32 1, %s10
  $region7: #{gcn_forward.1} parent=0 // loop_footer_branch
    %9 = sbr.rel target = $region3
  $region8: #{gcn_forward.1} parent=0 // loop_exit
    _

</llo_original>
